<compile_context>
chip_gen: v7x
topology: tpu7x:2x2x1
jax: 0.10.0
libtpu: 0.0.40
codegen_flags: <defaults>
</compile_context>

<pallas_src>
import functools

import jax
import jax.numpy as jnp
import numpy as np
from jax.experimental import pallas as pl
from jax.experimental.pallas import tpu as pltpu


def _recip(x):
    """EUP approximate reciprocal + two Newton steps (full f32 accuracy)."""
    r = pl.reciprocal(x, approx=True)
    r = r * (2.0 - x * r)
    r = r * (2.0 - x * r)
    return r


def _qs_fwd_kernel(x_ref, w_ref, h_ref, out_ref, lad_ref, *, num_bins,
                   tail_bound, min_bin_width, min_bin_height, strip):
    K = num_bins
    TB = tail_bound
    inv_2tb = 0.5 / TB
    w_scale = 1.0 - min_bin_width * K
    h_scale = 1.0 - min_bin_height
    n_strips = x_ref.shape[1] // strip

    def strip_body(j, carry):
        s0 = pl.multiple_of(j * strip, strip)
        sl = pl.ds(s0, strip)

        x = x_ref[:, sl]                                  # (8, strip)
        inside = (x >= -TB) & (x <= TB)
        xs = (jnp.where(inside, x, 0.0) + TB) * inv_2tb   # [-B, B] -> [0, 1]

        # ---- softmax over bins -> normalized widths (unrolled over K) --------
        w_rows = [w_ref[k, :, sl].astype(jnp.float32) for k in range(K)]
        m = w_rows[0]
        for k in range(1, K):
            m = jnp.maximum(m, w_rows[k])
        e = [jnp.exp(w_rows[k] - m) for k in range(K)]
        s = e[0]
        for k in range(1, K):
            s = s + e[k]
        inv_s = w_scale * _recip(s)
        for k in range(K):                                # widths, in place
            e[k] = min_bin_width + e[k] * inv_s
        widths = e

        # ---- normalize heights (PDF values at the K+1 bin edges) -------------
        uh = [jnp.exp(h_ref[k, :, sl].astype(jnp.float32)) for k in range(K + 1)]
        area2 = (uh[0] + uh[1]) * widths[0]               # 2 * area
        for k in range(1, K):
            area2 = area2 + (uh[k] + uh[k + 1]) * widths[k]
        inv_area = (2.0 * h_scale) * _recip(area2)
        for k in range(K + 1):                            # heights, in place
            uh[k] = min_bin_height + uh[k] * inv_area
        heights = uh

        # ---- fused cumsum + searchsorted + gather (monotone overwrite) -------
        # Bin 0 (left edge 0) seeds the accumulators; for k >= 1 the last bin
        # whose left edge <= xs wins.  cdf is accumulated doubled (cdf2).
        zero = jnp.zeros_like(xs)
        loc_l, cdf2_l = zero, zero
        h_l, h_r, w_b = heights[0], heights[1], widths[0]
        loc_run = widths[0]
        cdf2_run = (heights[0] + heights[1]) * widths[0]
        for k in range(1, K):
            ge = xs >= loc_run
            loc_l = jnp.where(ge, loc_run, loc_l)
            cdf2_l = jnp.where(ge, cdf2_run, cdf2_l)
            h_l = jnp.where(ge, heights[k], h_l)
            h_r = jnp.where(ge, heights[k + 1], h_r)
            w_b = jnp.where(ge, widths[k], w_b)
            if k < K - 1:
                loc_run = loc_run + widths[k]
                cdf2_run = cdf2_run + (heights[k] + heights[k + 1]) * widths[k]

        # ---- quadratic CDF evaluation -----------------------------------------
        dh = h_r - h_l
        a = 0.5 * dh * w_b
        b = h_l * w_b
        alpha = (xs - loc_l) * _recip(w_b)                # w_b >= min_bin_width > 0
        out_unit = jnp.clip(a * alpha * alpha + b * alpha + 0.5 * cdf2_l, 0.0, 1.0)
        lad = jnp.log(alpha * dh + h_l)                   # + log(2B) - log(2B) = 0

        y = out_unit * (2.0 * TB) - TB                    # [0,1] -> [-B, B]
        out_ref[:, sl] = jnp.where(inside, y, x)          # linear tails: identity
        lad_ref[:, sl] = jnp.where(inside, lad, 0.0)
        return carry

    jax.lax.fori_loop(0, n_strips, strip_body, 0)


def _round_up(a, b):
    return (a + b - 1) // b * b


def qs_forward(x, w_un, h_un, *, tail_bound, min_bin_width=1e-3,
               min_bin_height=1e-3, lane_tile=8192, param_dtype=jnp.float32):
    """QS.forward == unconstrained_quadratic_spline(..., inverse=False)."""
    K = w_un.shape[-1]
    assert h_un.shape[-1] == K + 1, "heights parametrize the K+1 bin edges"
    orig_shape = x.shape
    E = int(np.prod(orig_shape))
    SUB = 8

    # ---- tile selection: big tiles, >=2 grid steps when possible, padding ----
    L = -(-E // SUB)                                       # lanes needed
    tile = min(int(lane_tile), _round_up(max(-(-L // 2), 128), 128))
    tile = max(tile, 128)
    strip = min(256, tile)                                 # in-kernel strip size
    tile = _round_up(tile, strip)
    cols = _round_up(L, tile)
    grid_n = cols // tile
    total = SUB * cols
    pad = total - E

    # Elements packed 8 per sublane: element e lives at (e // cols, e % cols).
    x_flat = x.reshape(-1).astype(jnp.float32)
    if pad:
        x_flat = jnp.pad(x_flat, (0, pad))                 # pad x with 0 (finite)
    x_f = x_flat.reshape(SUB, cols)

    # TODO(synk): upstream conditioner should emit the bins-major (K, 8, cols)
    # layout directly; this relayout is ~60% of the op's HBM traffic.
    w_flat = w_un.reshape(E, K).astype(param_dtype)
    h_flat = h_un.reshape(E, K + 1).astype(param_dtype)
    if pad:
        w_flat = jnp.pad(w_flat, ((0, pad), (0, 0)))        # exp(0)=1 -> safe
        h_flat = jnp.pad(h_flat, ((0, pad), (0, 0)))
    w_t = jnp.transpose(w_flat).reshape(K, SUB, cols)
    h_t = jnp.transpose(h_flat).reshape(K + 1, SUB, cols)

    kernel = functools.partial(
        _qs_fwd_kernel, num_bins=K, tail_bound=float(tail_bound),
        min_bin_width=float(min_bin_width), min_bin_height=float(min_bin_height),
        strip=strip)

    p_bytes = jnp.dtype(param_dtype).itemsize
    cost = pl.CostEstimate(
        flops=int((20 * K + 40) * total),
        transcendentals=int((2 * K + 5) * total),          # exps + log + 3 recips
        bytes_accessed=int(total * (3 * 4 + (2 * K + 1) * p_bytes)),
    )

    out, lad = pl.pallas_call(
        kernel,
        out_shape=(jax.ShapeDtypeStruct((SUB, cols), jnp.float32),
                   jax.ShapeDtypeStruct((SUB, cols), jnp.float32)),
        grid=(grid_n,),
        in_specs=[pl.BlockSpec((SUB, tile), lambda i: (0, i)),
                  pl.BlockSpec((K, SUB, tile), lambda i: (0, 0, i)),
                  pl.BlockSpec((K + 1, SUB, tile), lambda i: (0, 0, i))],
        out_specs=(pl.BlockSpec((SUB, tile), lambda i: (0, i)),
                   pl.BlockSpec((SUB, tile), lambda i: (0, i))),
        compiler_params=pltpu.CompilerParams(
            dimension_semantics=("parallel",),
            vmem_limit_bytes=32 * 1024 * 1024),
        cost_estimate=cost,
    )(x_f, w_t, h_t)

    out = out.reshape(-1)[:E].reshape(orig_shape)
    lad = lad.reshape(-1)[:E].reshape(orig_shape)
    return out, lad


# ---- pure-JAX reference (mirrors nflows unconstrained_quadratic_spline) -------
def qs_forward_ref(x, w_un, h_un, tail_bound, min_bin_width=1e-3,
                   min_bin_height=1e-3):
    K = w_un.shape[-1]
    inside = (x >= -tail_bound) & (x <= tail_bound)
    xs = (jnp.where(inside, x, 0.0) + tail_bound) / (2.0 * tail_bound)
    widths = jax.nn.softmax(w_un, axis=-1)
    widths = min_bin_width + (1.0 - min_bin_width * K) * widths
    uh = jnp.exp(h_un)
    area = jnp.sum(0.5 * (uh[..., :-1] + uh[..., 1:]) * widths, -1, keepdims=True)
    heights = min_bin_height + (1.0 - min_bin_height) * uh / area
    cdf = jnp.cumsum(0.5 * (heights[..., :-1] + heights[..., 1:]) * widths, -1)
    cdf = cdf.at[..., -1].set(1.0)
    cdf = jnp.pad(cdf, [(0, 0)] * (cdf.ndim - 1) + [(1, 0)])
    loc = jnp.cumsum(widths, -1)
    loc = loc.at[..., -1].set(1.0)
    loc = jnp.pad(loc, [(0, 0)] * (loc.ndim - 1) + [(1, 0)])
    idx = jnp.sum((xs[..., None] >= loc.at[..., -1].add(1e-6)).astype(jnp.int32),
                  -1) - 1
    g = lambda t, i: jnp.take_along_axis(t, i[..., None], axis=-1)[..., 0]
    loc_l, cdf_l = g(loc, idx), g(cdf, idx)
    h_l, h_r, w_b = g(heights, idx), g(heights, idx + 1), g(widths, idx)
    a, b, c = 0.5 * (h_r - h_l) * w_b, h_l * w_b, cdf_l
    alpha = (xs - loc_l) / w_b
    y = jnp.clip(a * alpha ** 2 + b * alpha + c, 0.0, 1.0) * 2.0 * tail_bound - tail_bound
    lad = jnp.log(alpha * (h_r - h_l) + h_l)
    return jnp.where(inside, y, x), jnp.where(inside, lad, 0.0)


if __name__ == "__main__":
    # QS(tail_bound=3.0, num_bins=8) — the module has no learned parameters;
    # w_ and h_ are inputs (produced upstream by a conditioner net).
    tail_bound, num_bins = 3.0, 8
    B, C, H, W = 2, 4, 16, 16                    # NCHW-style flow input (E = 2048)
    key = jax.random.PRNGKey(0)
    kx, kw, kh = jax.random.split(key, 3)
    x = jax.random.normal(kx, (B, C, H, W), jnp.float32) * 2.0   # some tails outside
    w_ = jax.random.normal(kw, (B, C, H, W, num_bins), jnp.float32)
    h_ = jax.random.normal(kh, (B, C, H, W, num_bins + 1), jnp.float32)

    out, logabsdet = qs_forward(x, w_, h_, tail_bound=tail_bound)
    out, logabsdet = jax.block_until_ready((out, logabsdet))

    out_ref, lad_ref = qs_forward_ref(x, w_, h_, tail_bound)
    np.testing.assert_allclose(np.asarray(out), np.asarray(out_ref),
                               rtol=1e-4, atol=1e-5)
    np.testing.assert_allclose(np.asarray(logabsdet), np.asarray(lad_ref),
                               rtol=1e-4, atol=1e-5)

    # Awkward (non multiple-of-1024) shape exercises the padding path.
    k2x, k2w, k2h = jax.random.split(jax.random.PRNGKey(1), 3)
    x2 = jax.random.normal(k2x, (3, 5, 7), jnp.float32) * 2.0
    w2 = jax.random.normal(k2w, (3, 5, 7, num_bins), jnp.float32)
    h2 = jax.random.normal(k2h, (3, 5, 7, num_bins + 1), jnp.float32)
    out2, lad2 = jax.block_until_ready(qs_forward(x2, w2, h2, tail_bound=tail_bound))
    out2_ref, lad2_ref = qs_forward_ref(x2, w2, h2, tail_bound)
    np.testing.assert_allclose(np.asarray(out2), np.asarray(out2_ref),
                               rtol=1e-4, atol=1e-5)
    np.testing.assert_allclose(np.asarray(lad2), np.asarray(lad2_ref),
                               rtol=1e-4, atol=1e-5)

    print("KERNEL_OK")
</pallas_src>

<mosaic_0001>
module attributes {stable_mosaic.version = 11 : i64} {
  func.func @_qs_fwd_kernel(%arg0: i32, %arg1: memref<8x128xf32, #tpu.memory_space<vmem>>, %arg2: memref<8x8x128xf32, #tpu.memory_space<vmem>>, %arg3: memref<9x8x128xf32, #tpu.memory_space<vmem>>, %arg4: memref<8x128xf32, #tpu.memory_space<vmem>>, %arg5: memref<8x128xf32, #tpu.memory_space<vmem>>) attributes {dimension_semantics = [#tpu.dimension_semantics<parallel>], iteration_bounds = array<i64: 2>, scalar_prefetch = 0 : i64, scratch_operands = 0 : i64, tpu.core_type = #tpu.core_type<tc>, window_params = [{transform_indices = @transform_0, window_bounds = array<i64: 8, 128>}, {transform_indices = @transform_1, window_bounds = array<i64: 8, 8, 128>}, {transform_indices = @transform_2, window_bounds = array<i64: 9, 8, 128>}, {transform_indices = @transform_3, window_bounds = array<i64: 8, 128>}, {transform_indices = @transform_4, window_bounds = array<i64: 8, 128>}]} {
    %c0_i32 = arith.constant 0 : i32
    %c128_i32 = arith.constant 128 : i32
    %0 = arith.muli %c0_i32, %c128_i32 : i32
    %1 = tpu.assume_multiple %0, 128 : i32
    %c0 = arith.constant 0 : index
    %2 = arith.index_cast %1 : i32 to index
    %3 = vector.load %arg1[%c0, %2] : memref<8x128xf32, #tpu.memory_space<vmem>>, vector<8x128xf32>
    %cst = arith.constant -3.000000e+00 : f32
    %4 = vector.broadcast %cst : f32 to vector<8x128xf32>
    %5 = arith.cmpf oge, %3, %4 : vector<8x128xf32>
    %cst_0 = arith.constant 3.000000e+00 : f32
    %6 = vector.broadcast %cst_0 : f32 to vector<8x128xf32>
    %7 = arith.cmpf ole, %3, %6 : vector<8x128xf32>
    %8 = arith.andi %5, %7 : vector<8x128xi1>
    %cst_1 = arith.constant 0.000000e+00 : f32
    %9 = vector.broadcast %cst_1 : f32 to vector<8x128xf32>
    %10 = arith.select %8, %3, %9 : vector<8x128xi1>, vector<8x128xf32>
    %cst_2 = arith.constant 3.000000e+00 : f32
    %11 = vector.broadcast %cst_2 : f32 to vector<8x128xf32>
    %12 = arith.addf %10, %11 : vector<8x128xf32>
    %cst_3 = arith.constant 0.166666672 : f32
    %13 = vector.broadcast %cst_3 : f32 to vector<8x128xf32>
    %14 = arith.mulf %12, %13 : vector<8x128xf32>
    %c0_4 = arith.constant 0 : index
    %c0_5 = arith.constant 0 : index
    %15 = arith.index_cast %1 : i32 to index
    %16 = vector.load %arg2[%c0_4, %c0_5, %15] : memref<8x8x128xf32, #tpu.memory_space<vmem>>, vector<1x8x128xf32>
    %17 = vector.shape_cast %16 : vector<1x8x128xf32> to vector<8x128xf32>
    %c1 = arith.constant 1 : index
    %c0_6 = arith.constant 0 : index
    %18 = arith.index_cast %1 : i32 to index
    %19 = vector.load %arg2[%c1, %c0_6, %18] : memref<8x8x128xf32, #tpu.memory_space<vmem>>, vector<1x8x128xf32>
    %20 = vector.shape_cast %19 : vector<1x8x128xf32> to vector<8x128xf32>
    %c2 = arith.constant 2 : index
    %c0_7 = arith.constant 0 : index
    %21 = arith.index_cast %1 : i32 to index
    %22 = vector.load %arg2[%c2, %c0_7, %21] : memref<8x8x128xf32, #tpu.memory_space<vmem>>, vector<1x8x128xf32>
    %23 = vector.shape_cast %22 : vector<1x8x128xf32> to vector<8x128xf32>
    %c3 = arith.constant 3 : index
    %c0_8 = arith.constant 0 : index
    %24 = arith.index_cast %1 : i32 to index
    %25 = vector.load %arg2[%c3, %c0_8, %24] : memref<8x8x128xf32, #tpu.memory_space<vmem>>, vector<1x8x128xf32>
    %26 = vector.shape_cast %25 : vector<1x8x128xf32> to vector<8x128xf32>
    %c4 = arith.constant 4 : index
    %c0_9 = arith.constant 0 : index
    %27 = arith.index_cast %1 : i32 to index
    %28 = vector.load %arg2[%c4, %c0_9, %27] : memref<8x8x128xf32, #tpu.memory_space<vmem>>, vector<1x8x128xf32>
    %29 = vector.shape_cast %28 : vector<1x8x128xf32> to vector<8x128xf32>
    %c5 = arith.constant 5 : index
    %c0_10 = arith.constant 0 : index
    %30 = arith.index_cast %1 : i32 to index
    %31 = vector.load %arg2[%c5, %c0_10, %30] : memref<8x8x128xf32, #tpu.memory_space<vmem>>, vector<1x8x128xf32>
    %32 = vector.shape_cast %31 : vector<1x8x128xf32> to vector<8x128xf32>
    %c6 = arith.constant 6 : index
    %c0_11 = arith.constant 0 : index
    %33 = arith.index_cast %1 : i32 to index
    %34 = vector.load %arg2[%c6, %c0_11, %33] : memref<8x8x128xf32, #tpu.memory_space<vmem>>, vector<1x8x128xf32>
    %35 = vector.shape_cast %34 : vector<1x8x128xf32> to vector<8x128xf32>
    %c7 = arith.constant 7 : index
    %c0_12 = arith.constant 0 : index
    %36 = arith.index_cast %1 : i32 to index
    %37 = vector.load %arg2[%c7, %c0_12, %36] : memref<8x8x128xf32, #tpu.memory_space<vmem>>, vector<1x8x128xf32>
    %38 = vector.shape_cast %37 : vector<1x8x128xf32> to vector<8x128xf32>
    %39 = arith.maximumf %17, %20 : vector<8x128xf32>
    %40 = arith.maximumf %39, %23 : vector<8x128xf32>
    %41 = arith.maximumf %40, %26 : vector<8x128xf32>
    %42 = arith.maximumf %41, %29 : vector<8x128xf32>
    %43 = arith.maximumf %42, %32 : vector<8x128xf32>
    %44 = arith.maximumf %43, %35 : vector<8x128xf32>
    %45 = arith.maximumf %44, %38 : vector<8x128xf32>
    %46 = arith.subf %17, %45 : vector<8x128xf32>
    %47 = math.exp %46 : vector<8x128xf32>
    %48 = arith.subf %20, %45 : vector<8x128xf32>
    %49 = math.exp %48 : vector<8x128xf32>
    %50 = arith.subf %23, %45 : vector<8x128xf32>
    %51 = math.exp %50 : vector<8x128xf32>
    %52 = arith.subf %26, %45 : vector<8x128xf32>
    %53 = math.exp %52 : vector<8x128xf32>
    %54 = arith.subf %29, %45 : vector<8x128xf32>
    %55 = math.exp %54 : vector<8x128xf32>
    %56 = arith.subf %32, %45 : vector<8x128xf32>
    %57 = math.exp %56 : vector<8x128xf32>
    %58 = arith.subf %35, %45 : vector<8x128xf32>
    %59 = math.exp %58 : vector<8x128xf32>
    %60 = arith.subf %38, %45 : vector<8x128xf32>
    %61 = math.exp %60 : vector<8x128xf32>
    %62 = arith.addf %47, %49 : vector<8x128xf32>
    %63 = arith.addf %62, %51 : vector<8x128xf32>
    %64 = arith.addf %63, %53 : vector<8x128xf32>
    %65 = arith.addf %64, %55 : vector<8x128xf32>
    %66 = arith.addf %65, %57 : vector<8x128xf32>
    %67 = arith.addf %66, %59 : vector<8x128xf32>
    %68 = arith.addf %67, %61 : vector<8x128xf32>
    %69 = tpu.reciprocal %68 {approx = true} : vector<8x128xf32> -> vector<8x128xf32>
    %70 = arith.mulf %68, %69 : vector<8x128xf32>
    %cst_13 = arith.constant 2.000000e+00 : f32
    %71 = vector.broadcast %cst_13 : f32 to vector<8x128xf32>
    %72 = arith.subf %71, %70 : vector<8x128xf32>
    %73 = arith.mulf %69, %72 : vector<8x128xf32>
    %74 = arith.mulf %68, %73 : vector<8x128xf32>
    %cst_14 = arith.constant 2.000000e+00 : f32
    %75 = vector.broadcast %cst_14 : f32 to vector<8x128xf32>
    %76 = arith.subf %75, %74 : vector<8x128xf32>
    %77 = arith.mulf %73, %76 : vector<8x128xf32>
    %cst_15 = arith.constant 0.991999983 : f32
    %78 = vector.broadcast %cst_15 : f32 to vector<8x128xf32>
    %79 = arith.mulf %78, %77 : vector<8x128xf32>
    %80 = arith.mulf %47, %79 : vector<8x128xf32>
    %cst_16 = arith.constant 1.000000e-03 : f32
    %81 = vector.broadcast %cst_16 : f32 to vector<8x128xf32>
    %82 = arith.addf %81, %80 : vector<8x128xf32>
    %83 = arith.mulf %49, %79 : vector<8x128xf32>
    %cst_17 = arith.constant 1.000000e-03 : f32
    %84 = vector.broadcast %cst_17 : f32 to vector<8x128xf32>
    %85 = arith.addf %84, %83 : vector<8x128xf32>
    %86 = arith.mulf %51, %79 : vector<8x128xf32>
    %cst_18 = arith.constant 1.000000e-03 : f32
    %87 = vector.broadcast %cst_18 : f32 to vector<8x128xf32>
    %88 = arith.addf %87, %86 : vector<8x128xf32>
    %89 = arith.mulf %53, %79 : vector<8x128xf32>
    %cst_19 = arith.constant 1.000000e-03 : f32
    %90 = vector.broadcast %cst_19 : f32 to vector<8x128xf32>
    %91 = arith.addf %90, %89 : vector<8x128xf32>
    %92 = arith.mulf %55, %79 : vector<8x128xf32>
    %cst_20 = arith.constant 1.000000e-03 : f32
    %93 = vector.broadcast %cst_20 : f32 to vector<8x128xf32>
    %94 = arith.addf %93, %92 : vector<8x128xf32>
    %95 = arith.mulf %57, %79 : vector<8x128xf32>
    %cst_21 = arith.constant 1.000000e-03 : f32
    %96 = vector.broadcast %cst_21 : f32 to vector<8x128xf32>
    %97 = arith.addf %96, %95 : vector<8x128xf32>
    %98 = arith.mulf %59, %79 : vector<8x128xf32>
    %cst_22 = arith.constant 1.000000e-03 : f32
    %99 = vector.broadcast %cst_22 : f32 to vector<8x128xf32>
    %100 = arith.addf %99, %98 : vector<8x128xf32>
    %101 = arith.mulf %61, %79 : vector<8x128xf32>
    %cst_23 = arith.constant 1.000000e-03 : f32
    %102 = vector.broadcast %cst_23 : f32 to vector<8x128xf32>
    %103 = arith.addf %102, %101 : vector<8x128xf32>
    %c0_24 = arith.constant 0 : index
    %c0_25 = arith.constant 0 : index
    %104 = arith.index_cast %1 : i32 to index
    %105 = vector.load %arg3[%c0_24, %c0_25, %104] : memref<9x8x128xf32, #tpu.memory_space<vmem>>, vector<1x8x128xf32>
    %106 = vector.shape_cast %105 : vector<1x8x128xf32> to vector<8x128xf32>
    %107 = math.exp %106 : vector<8x128xf32>
    %c1_26 = arith.constant 1 : index
    %c0_27 = arith.constant 0 : index
    %108 = arith.index_cast %1 : i32 to index
    %109 = vector.load %arg3[%c1_26, %c0_27, %108] : memref<9x8x128xf32, #tpu.memory_space<vmem>>, vector<1x8x128xf32>
    %110 = vector.shape_cast %109 : vector<1x8x128xf32> to vector<8x128xf32>
    %111 = math.exp %110 : vector<8x128xf32>
    %c2_28 = arith.constant 2 : index
    %c0_29 = arith.constant 0 : index
    %112 = arith.index_cast %1 : i32 to index
    %113 = vector.load %arg3[%c2_28, %c0_29, %112] : memref<9x8x128xf32, #tpu.memory_space<vmem>>, vector<1x8x128xf32>
    %114 = vector.shape_cast %113 : vector<1x8x128xf32> to vector<8x128xf32>
    %115 = math.exp %114 : vector<8x128xf32>
    %c3_30 = arith.constant 3 : index
    %c0_31 = arith.constant 0 : index
    %116 = arith.index_cast %1 : i32 to index
    %117 = vector.load %arg3[%c3_30, %c0_31, %116] : memref<9x8x128xf32, #tpu.memory_space<vmem>>, vector<1x8x128xf32>
    %118 = vector.shape_cast %117 : vector<1x8x128xf32> to vector<8x128xf32>
    %119 = math.exp %118 : vector<8x128xf32>
    %c4_32 = arith.constant 4 : index
    %c0_33 = arith.constant 0 : index
    %120 = arith.index_cast %1 : i32 to index
    %121 = vector.load %arg3[%c4_32, %c0_33, %120] : memref<9x8x128xf32, #tpu.memory_space<vmem>>, vector<1x8x128xf32>
    %122 = vector.shape_cast %121 : vector<1x8x128xf32> to vector<8x128xf32>
    %123 = math.exp %122 : vector<8x128xf32>
    %c5_34 = arith.constant 5 : index
    %c0_35 = arith.constant 0 : index
    %124 = arith.index_cast %1 : i32 to index
    %125 = vector.load %arg3[%c5_34, %c0_35, %124] : memref<9x8x128xf32, #tpu.memory_space<vmem>>, vector<1x8x128xf32>
    %126 = vector.shape_cast %125 : vector<1x8x128xf32> to vector<8x128xf32>
    %127 = math.exp %126 : vector<8x128xf32>
    %c6_36 = arith.constant 6 : index
    %c0_37 = arith.constant 0 : index
    %128 = arith.index_cast %1 : i32 to index
    %129 = vector.load %arg3[%c6_36, %c0_37, %128] : memref<9x8x128xf32, #tpu.memory_space<vmem>>, vector<1x8x128xf32>
    %130 = vector.shape_cast %129 : vector<1x8x128xf32> to vector<8x128xf32>
    %131 = math.exp %130 : vector<8x128xf32>
    %c7_38 = arith.constant 7 : index
    %c0_39 = arith.constant 0 : index
    %132 = arith.index_cast %1 : i32 to index
    %133 = vector.load %arg3[%c7_38, %c0_39, %132] : memref<9x8x128xf32, #tpu.memory_space<vmem>>, vector<1x8x128xf32>
    %134 = vector.shape_cast %133 : vector<1x8x128xf32> to vector<8x128xf32>
    %135 = math.exp %134 : vector<8x128xf32>
    %c8 = arith.constant 8 : index
    %c0_40 = arith.constant 0 : index
    %136 = arith.index_cast %1 : i32 to index
    %137 = vector.load %arg3[%c8, %c0_40, %136] : memref<9x8x128xf32, #tpu.memory_space<vmem>>, vector<1x8x128xf32>
    %138 = vector.shape_cast %137 : vector<1x8x128xf32> to vector<8x128xf32>
    %139 = math.exp %138 : vector<8x128xf32>
    %140 = arith.addf %107, %111 : vector<8x128xf32>
    %141 = arith.mulf %140, %82 : vector<8x128xf32>
    %142 = arith.addf %111, %115 : vector<8x128xf32>
    %143 = arith.mulf %142, %85 : vector<8x128xf32>
    %144 = arith.addf %141, %143 : vector<8x128xf32>
    %145 = arith.addf %115, %119 : vector<8x128xf32>
    %146 = arith.mulf %145, %88 : vector<8x128xf32>
    %147 = arith.addf %144, %146 : vector<8x128xf32>
    %148 = arith.addf %119, %123 : vector<8x128xf32>
    %149 = arith.mulf %148, %91 : vector<8x128xf32>
    %150 = arith.addf %147, %149 : vector<8x128xf32>
    %151 = arith.addf %123, %127 : vector<8x128xf32>
    %152 = arith.mulf %151, %94 : vector<8x128xf32>
    %153 = arith.addf %150, %152 : vector<8x128xf32>
    %154 = arith.addf %127, %131 : vector<8x128xf32>
    %155 = arith.mulf %154, %97 : vector<8x128xf32>
    %156 = arith.addf %153, %155 : vector<8x128xf32>
    %157 = arith.addf %131, %135 : vector<8x128xf32>
    %158 = arith.mulf %157, %100 : vector<8x128xf32>
    %159 = arith.addf %156, %158 : vector<8x128xf32>
    %160 = arith.addf %135, %139 : vector<8x128xf32>
    %161 = arith.mulf %160, %103 : vector<8x128xf32>
    %162 = arith.addf %159, %161 : vector<8x128xf32>
    %163 = tpu.reciprocal %162 {approx = true} : vector<8x128xf32> -> vector<8x128xf32>
    %164 = arith.mulf %162, %163 : vector<8x128xf32>
    %cst_41 = arith.constant 2.000000e+00 : f32
    %165 = vector.broadcast %cst_41 : f32 to vector<8x128xf32>
    %166 = arith.subf %165, %164 : vector<8x128xf32>
    %167 = arith.mulf %163, %166 : vector<8x128xf32>
    %168 = arith.mulf %162, %167 : vector<8x128xf32>
    %cst_42 = arith.constant 2.000000e+00 : f32
    %169 = vector.broadcast %cst_42 : f32 to vector<8x128xf32>
    %170 = arith.subf %169, %168 : vector<8x128xf32>
    %171 = arith.mulf %167, %170 : vector<8x128xf32>
    %cst_43 = arith.constant 1.998000e+00 : f32
    %172 = vector.broadcast %cst_43 : f32 to vector<8x128xf32>
    %173 = arith.mulf %172, %171 : vector<8x128xf32>
    %174 = arith.mulf %107, %173 : vector<8x128xf32>
    %cst_44 = arith.constant 1.000000e-03 : f32
    %175 = vector.broadcast %cst_44 : f32 to vector<8x128xf32>
    %176 = arith.addf %175, %174 : vector<8x128xf32>
    %177 = arith.mulf %111, %173 : vector<8x128xf32>
    %cst_45 = arith.constant 1.000000e-03 : f32
    %178 = vector.broadcast %cst_45 : f32 to vector<8x128xf32>
    %179 = arith.addf %178, %177 : vector<8x128xf32>
    %180 = arith.mulf %115, %173 : vector<8x128xf32>
    %cst_46 = arith.constant 1.000000e-03 : f32
    %181 = vector.broadcast %cst_46 : f32 to vector<8x128xf32>
    %182 = arith.addf %181, %180 : vector<8x128xf32>
    %183 = arith.mulf %119, %173 : vector<8x128xf32>
    %cst_47 = arith.constant 1.000000e-03 : f32
    %184 = vector.broadcast %cst_47 : f32 to vector<8x128xf32>
    %185 = arith.addf %184, %183 : vector<8x128xf32>
    %186 = arith.mulf %123, %173 : vector<8x128xf32>
    %cst_48 = arith.constant 1.000000e-03 : f32
    %187 = vector.broadcast %cst_48 : f32 to vector<8x128xf32>
    %188 = arith.addf %187, %186 : vector<8x128xf32>
    %189 = arith.mulf %127, %173 : vector<8x128xf32>
    %cst_49 = arith.constant 1.000000e-03 : f32
    %190 = vector.broadcast %cst_49 : f32 to vector<8x128xf32>
    %191 = arith.addf %190, %189 : vector<8x128xf32>
    %192 = arith.mulf %131, %173 : vector<8x128xf32>
    %cst_50 = arith.constant 1.000000e-03 : f32
    %193 = vector.broadcast %cst_50 : f32 to vector<8x128xf32>
    %194 = arith.addf %193, %192 : vector<8x128xf32>
    %195 = arith.mulf %135, %173 : vector<8x128xf32>
    %cst_51 = arith.constant 1.000000e-03 : f32
    %196 = vector.broadcast %cst_51 : f32 to vector<8x128xf32>
    %197 = arith.addf %196, %195 : vector<8x128xf32>
    %198 = arith.mulf %139, %173 : vector<8x128xf32>
    %cst_52 = arith.constant 1.000000e-03 : f32
    %199 = vector.broadcast %cst_52 : f32 to vector<8x128xf32>
    %200 = arith.addf %199, %198 : vector<8x128xf32>
    %cst_53 = arith.constant 0.000000e+00 : f32
    %201 = vector.broadcast %cst_53 : f32 to vector<8x128xf32>
    %202 = arith.addf %176, %179 : vector<8x128xf32>
    %203 = arith.mulf %202, %82 : vector<8x128xf32>
    %204 = arith.cmpf oge, %14, %82 : vector<8x128xf32>
    %205 = arith.select %204, %82, %201 : vector<8x128xi1>, vector<8x128xf32>
    %206 = arith.select %204, %203, %201 : vector<8x128xi1>, vector<8x128xf32>
    %207 = arith.select %204, %179, %176 : vector<8x128xi1>, vector<8x128xf32>
    %208 = arith.select %204, %182, %179 : vector<8x128xi1>, vector<8x128xf32>
    %209 = arith.select %204, %85, %82 : vector<8x128xi1>, vector<8x128xf32>
    %210 = arith.addf %82, %85 : vector<8x128xf32>
    %211 = arith.addf %179, %182 : vector<8x128xf32>
    %212 = arith.mulf %211, %85 : vector<8x128xf32>
    %213 = arith.addf %203, %212 : vector<8x128xf32>
    %214 = arith.cmpf oge, %14, %210 : vector<8x128xf32>
    %215 = arith.select %214, %210, %205 : vector<8x128xi1>, vector<8x128xf32>
    %216 = arith.select %214, %213, %206 : vector<8x128xi1>, vector<8x128xf32>
    %217 = arith.select %214, %182, %207 : vector<8x128xi1>, vector<8x128xf32>
    %218 = arith.select %214, %185, %208 : vector<8x128xi1>, vector<8x128xf32>
    %219 = arith.select %214, %88, %209 : vector<8x128xi1>, vector<8x128xf32>
    %220 = arith.addf %210, %88 : vector<8x128xf32>
    %221 = arith.addf %182, %185 : vector<8x128xf32>
    %222 = arith.mulf %221, %88 : vector<8x128xf32>
    %223 = arith.addf %213, %222 : vector<8x128xf32>
    %224 = arith.cmpf oge, %14, %220 : vector<8x128xf32>
    %225 = arith.select %224, %220, %215 : vector<8x128xi1>, vector<8x128xf32>
    %226 = arith.select %224, %223, %216 : vector<8x128xi1>, vector<8x128xf32>
    %227 = arith.select %224, %185, %217 : vector<8x128xi1>, vector<8x128xf32>
    %228 = arith.select %224, %188, %218 : vector<8x128xi1>, vector<8x128xf32>
    %229 = arith.select %224, %91, %219 : vector<8x128xi1>, vector<8x128xf32>
    %230 = arith.addf %220, %91 : vector<8x128xf32>
    %231 = arith.addf %185, %188 : vector<8x128xf32>
    %232 = arith.mulf %231, %91 : vector<8x128xf32>
    %233 = arith.addf %223, %232 : vector<8x128xf32>
    %234 = arith.cmpf oge, %14, %230 : vector<8x128xf32>
    %235 = arith.select %234, %230, %225 : vector<8x128xi1>, vector<8x128xf32>
    %236 = arith.select %234, %233, %226 : vector<8x128xi1>, vector<8x128xf32>
    %237 = arith.select %234, %188, %227 : vector<8x128xi1>, vector<8x128xf32>
    %238 = arith.select %234, %191, %228 : vector<8x128xi1>, vector<8x128xf32>
    %239 = arith.select %234, %94, %229 : vector<8x128xi1>, vector<8x128xf32>
    %240 = arith.addf %230, %94 : vector<8x128xf32>
    %241 = arith.addf %188, %191 : vector<8x128xf32>
    %242 = arith.mulf %241, %94 : vector<8x128xf32>
    %243 = arith.addf %233, %242 : vector<8x128xf32>
    %244 = arith.cmpf oge, %14, %240 : vector<8x128xf32>
    %245 = arith.select %244, %240, %235 : vector<8x128xi1>, vector<8x128xf32>
    %246 = arith.select %244, %243, %236 : vector<8x128xi1>, vector<8x128xf32>
    %247 = arith.select %244, %191, %237 : vector<8x128xi1>, vector<8x128xf32>
    %248 = arith.select %244, %194, %238 : vector<8x128xi1>, vector<8x128xf32>
    %249 = arith.select %244, %97, %239 : vector<8x128xi1>, vector<8x128xf32>
    %250 = arith.addf %240, %97 : vector<8x128xf32>
    %251 = arith.addf %191, %194 : vector<8x128xf32>
    %252 = arith.mulf %251, %97 : vector<8x128xf32>
    %253 = arith.addf %243, %252 : vector<8x128xf32>
    %254 = arith.cmpf oge, %14, %250 : vector<8x128xf32>
    %255 = arith.select %254, %250, %245 : vector<8x128xi1>, vector<8x128xf32>
    %256 = arith.select %254, %253, %246 : vector<8x128xi1>, vector<8x128xf32>
    %257 = arith.select %254, %194, %247 : vector<8x128xi1>, vector<8x128xf32>
    %258 = arith.select %254, %197, %248 : vector<8x128xi1>, vector<8x128xf32>
    %259 = arith.select %254, %100, %249 : vector<8x128xi1>, vector<8x128xf32>
    %260 = arith.addf %250, %100 : vector<8x128xf32>
    %261 = arith.addf %194, %197 : vector<8x128xf32>
    %262 = arith.mulf %261, %100 : vector<8x128xf32>
    %263 = arith.addf %253, %262 : vector<8x128xf32>
    %264 = arith.cmpf oge, %14, %260 : vector<8x128xf32>
    %265 = arith.select %264, %260, %255 : vector<8x128xi1>, vector<8x128xf32>
    %266 = arith.select %264, %263, %256 : vector<8x128xi1>, vector<8x128xf32>
    %267 = arith.select %264, %197, %257 : vector<8x128xi1>, vector<8x128xf32>
    %268 = arith.select %264, %200, %258 : vector<8x128xi1>, vector<8x128xf32>
    %269 = arith.select %264, %103, %259 : vector<8x128xi1>, vector<8x128xf32>
    %270 = arith.subf %268, %267 : vector<8x128xf32>
    %cst_54 = arith.constant 5.000000e-01 : f32
    %271 = vector.broadcast %cst_54 : f32 to vector<8x128xf32>
    %272 = arith.mulf %271, %270 : vector<8x128xf32>
    %273 = arith.mulf %272, %269 : vector<8x128xf32>
    %274 = arith.mulf %267, %269 : vector<8x128xf32>
    %275 = arith.subf %14, %265 : vector<8x128xf32>
    %276 = tpu.reciprocal %269 {approx = true} : vector<8x128xf32> -> vector<8x128xf32>
    %277 = arith.mulf %269, %276 : vector<8x128xf32>
    %cst_55 = arith.constant 2.000000e+00 : f32
    %278 = vector.broadcast %cst_55 : f32 to vector<8x128xf32>
    %279 = arith.subf %278, %277 : vector<8x128xf32>
    %280 = arith.mulf %276, %279 : vector<8x128xf32>
    %281 = arith.mulf %269, %280 : vector<8x128xf32>
    %cst_56 = arith.constant 2.000000e+00 : f32
    %282 = vector.broadcast %cst_56 : f32 to vector<8x128xf32>
    %283 = arith.subf %282, %281 : vector<8x128xf32>
    %284 = arith.mulf %280, %283 : vector<8x128xf32>
    %285 = arith.mulf %275, %284 : vector<8x128xf32>
    %286 = arith.mulf %273, %285 : vector<8x128xf32>
    %287 = arith.mulf %286, %285 : vector<8x128xf32>
    %288 = arith.mulf %274, %285 : vector<8x128xf32>
    %289 = arith.addf %287, %288 : vector<8x128xf32>
    %cst_57 = arith.constant 5.000000e-01 : f32
    %290 = vector.broadcast %cst_57 : f32 to vector<8x128xf32>
    %291 = arith.mulf %290, %266 : vector<8x128xf32>
    %292 = arith.addf %289, %291 : vector<8x128xf32>
    %cst_58 = arith.constant 0.000000e+00 : f32
    %cst_59 = arith.constant 1.000000e+00 : f32
    %293 = vector.broadcast %cst_58 : f32 to vector<8x128xf32>
    %294 = arith.maximumf %293, %292 : vector<8x128xf32>
    %295 = vector.broadcast %cst_59 : f32 to vector<8x128xf32>
    %296 = arith.minimumf %295, %294 : vector<8x128xf32>
    %297 = arith.mulf %285, %270 : vector<8x128xf32>
    %298 = arith.addf %297, %267 : vector<8x128xf32>
    %299 = math.log %298 : vector<8x128xf32>
    %cst_60 = arith.constant 6.000000e+00 : f32
    %300 = vector.broadcast %cst_60 : f32 to vector<8x128xf32>
    %301 = arith.mulf %296, %300 : vector<8x128xf32>
    %cst_61 = arith.constant 3.000000e+00 : f32
    %302 = vector.broadcast %cst_61 : f32 to vector<8x128xf32>
    %303 = arith.subf %301, %302 : vector<8x128xf32>
    %304 = arith.select %8, %303, %3 : vector<8x128xi1>, vector<8x128xf32>
    %c0_62 = arith.constant 0 : index
    %305 = arith.index_cast %1 : i32 to index
    %306 = vector.load %arg4[%c0_62, %305] : memref<8x128xf32, #tpu.memory_space<vmem>>, vector<8x128xf32>
    tpu.vector_store %arg4[%c0_62, %305], %304 {strides = array<i32>} : memref<8x128xf32, #tpu.memory_space<vmem>>, vector<8x128xf32>,
    %cst_63 = arith.constant 0.000000e+00 : f32
    %307 = vector.broadcast %cst_63 : f32 to vector<8x128xf32>
    %308 = arith.select %8, %299, %307 : vector<8x128xi1>, vector<8x128xf32>
    %c0_64 = arith.constant 0 : index
    %309 = arith.index_cast %1 : i32 to index
    %310 = vector.load %arg5[%c0_64, %309] : memref<8x128xf32, #tpu.memory_space<vmem>>, vector<8x128xf32>
    tpu.vector_store %arg5[%c0_64, %309], %308 {strides = array<i32>} : memref<8x128xf32, #tpu.memory_space<vmem>>, vector<8x128xf32>,
    %c1_i32 = arith.constant 1 : i32
    return
  }
  func.func @transform_0(%arg0: i32) -> (i32, i32) {
    %c0_i32 = arith.constant 0 : i32
    %c0_i32_0 = arith.constant 0 : i32
    return %c0_i32, %arg0 : i32, i32
  }
  func.func @transform_1(%arg0: i32) -> (i32, i32, i32) {
    %c0_i32 = arith.constant 0 : i32
    %c0_i32_0 = arith.constant 0 : i32
    %c0_i32_1 = arith.constant 0 : i32
    return %c0_i32, %c0_i32_0, %arg0 : i32, i32, i32
  }
  func.func @transform_2(%arg0: i32) -> (i32, i32, i32) {
    %c0_i32 = arith.constant 0 : i32
    %c0_i32_0 = arith.constant 0 : i32
    %c0_i32_1 = arith.constant 0 : i32
    return %c0_i32, %c0_i32_0, %arg0 : i32, i32, i32
  }
  func.func @transform_3(%arg0: i32) -> (i32, i32) {
    %c0_i32 = arith.constant 0 : i32
    %c0_i32_0 = arith.constant 0 : i32
    return %c0_i32, %arg0 : i32, i32
  }
  func.func @transform_4(%arg0: i32) -> (i32, i32) {
    %c0_i32 = arith.constant 0 : i32
    %c0_i32_0 = arith.constant 0 : i32
    return %c0_i32, %arg0 : i32, i32
  }
}

</mosaic_0001>

<llo_original>
// kernel: tpu_custom_call.1
$region0: #{tpu_custom_call.1}
  #allocation0 [shape = 'u32[]', space=smem, size = 0x4, offset = 0x4, fixed_abs, tag = 'smem constant byte address 0x4 - core index']
  #allocation1 [shape = 'u32[144,128]{1,0:T(1,128)}', space=vmem, size = 0x12000, scoped, tag = 'internal scratch']
  %s0 = inlined_call_operand.hbm [shape: f32[8,256], index: 0, kind: input, shape index: {}]
  %s1 = inlined_call_operand.hbm [shape: f32[8,8,256], index: 1, kind: input, shape index: {}]
  %s2 = inlined_call_operand.hbm [shape: f32[9,8,256], index: 2, kind: input, shape index: {}]
  %s3 = inlined_call_operand.hbm [shape: f32[8,256], index: 3, kind: output, shape index: {0}]
  %s4 = inlined_call_operand.hbm [shape: f32[8,256], index: 4, kind: output, shape index: {1}]
  %5 = xla_tuple %s3, %s4
  %s6 = sld [smem:[#allocation0]]
  $region65: #{tpu_custom_call.1} parent=0
    _
  %s8 = ssub.s32 1, %s6
  %s9 = scalar_select 0, %s8, %s6
  $region1: #{tpu_custom_call.1} parent=0
    #allocation2 [shape = 'u8[8192]{0}', space=vmem, size = 0x2000, scoped, tag = 'input window, operand 0']
    #allocation3 [shape = 's32[2]{0}', space=sflag, size = 0x8, scoped, tag = 'scoped memory for tpu_custom_call.1']
    #allocation4 [shape = 's32[2]{0}', space=sflag, size = 0x8, scoped, tag = 'scoped memory for tpu_custom_call.1']
    #allocation5 [shape = 'u8[65536]{0}', space=vmem, size = 0x10000, scoped, tag = 'input window, operand 1']
    #allocation6 [shape = 's32[2]{0}', space=sflag, size = 0x8, scoped, tag = 'scoped memory for tpu_custom_call.1']
    #allocation7 [shape = 'u8[73728]{0}', space=vmem, size = 0x12000, scoped, tag = 'input window, operand 2']
    #allocation8 [shape = 'u8[8192]{0}', space=vmem, size = 0x2000, scoped, tag = 'output window, operand 0']
    #allocation9 [shape = 'u8[8192]{0}', space=vmem, size = 0x2000, scoped, tag = 'output window, operand 1']
    #allocation10 [shape = 's32[2]{0}', space=sflag, size = 0x8, scoped, tag = 'scoped memory for tpu_custom_call.1']
    %10 = vsyncpa [#allocation3], 0
    %s11 = scalar_lea.sflag [#allocation3], 1
    %12 = vsyncpa %s11, 0
    %13 = vsyncpa [#allocation6], 0
    %s14 = scalar_lea.sflag [#allocation6], 1
    %15 = vsyncpa %s14, 0
    %16 = vsyncpa [#allocation4], 0
    %s17 = scalar_lea.sflag [#allocation4], 1
    %18 = vsyncpa %s17, 0
    %19 = vsyncpa [#allocation10], 0
    %s20 = scalar_lea.sflag [#allocation10], 1
    %21 = vsyncpa %s20, 0
    loop: start=0, step=1, limit=4
    $region2: #{tpu_custom_call.1} parent=1 // loop_pre_header
      _
    $region3: #{tpu_custom_call.1} parent=1 // loop_header
      %s23 = sphi 0, %s27
      %p24 = scmp.ge.s32.totalorder %s23, 4
      %s33 = sphi 0, %s35
      %s36 = sphi 0, %s33
      %s37 = sphi 0, %s36
      %s53 = sphi 0, %s37
      %s59 = sphi 0, %s61
      %s62 = sphi 0, %s59
      %s63 = sphi 0, %s62
      %s79 = sphi 0, %s63
      %s85 = sphi 0, %s87
      %s88 = sphi 0, %s85
      %s89 = sphi 0, %s88
      %s105 = sphi 0, %s89
      %s111 = sphi 0, %s113
      %s114 = sphi 0, %s111
      %s115 = sphi 0, %s114
      %s131 = sphi 0, %s115
      %s137 = sphi 0, %s139
      %s140 = sphi 0, %s137
      %s141 = sphi 0, %s140
      %s157 = sphi 0, %s141
    $region4: #{tpu_custom_call.1} parent=1 // loop_header_branch
      %26 = sbr.rel (%p24) target = $region8
    $region5: #{tpu_custom_call.1} parent=1 // loop_body
      %s28 = ssub.s32 %s23, 1
      %s29 = ssub.s32 %s23, 2
      %s30 = sadd.s32 %s23, 1
      %s31 = ssub.s32 %s23, %s30
      %p32 = scmp.eq.s32.totalorder %s31, 0
      %s34 = sadd.s32 %s33, 1
      %s35 = scalar_select %p32, %s33, %s34
      %p38 = pneg %p32
      %p39 = scmp.eq.s32.totalorder %s23, 1
      %p40 = por %p38, %p39
      %p41 = scmp.ne.s32.totalorder %s33, %s36
      %p42 = scmp.eq.s32.totalorder %s23, 0
      %p43 = por %p41, %p42
      %p44 = scmp.ne.s32.totalorder %s33, %s36
      %p45 = scmp.eq.s32.totalorder %s28, 1
      %p46 = por %p44, %p45
      %p47 = scmp.ne.s32.totalorder %s36, %s37
      %p48 = scmp.eq.s32.totalorder %s28, 0
      %p49 = por %p47, %p48
      %p50 = scmp.ne.s32.totalorder %s36, %s37
      %p51 = scmp.eq.s32.totalorder %s29, 1
      %p52 = por %p50, %p51
      %p54 = scmp.ne.s32.totalorder %s37, %s53
      %p55 = scmp.eq.s32.totalorder %s29, 0
      %p56 = por %p54, %p55
      %s57 = ssub.s32 %s23, %s30
      %p58 = scmp.eq.s32.totalorder %s57, 0
      %s60 = sadd.s32 %s59, 1
      %s61 = scalar_select %p58, %s59, %s60
      %p64 = pneg %p58
      %p65 = scmp.eq.s32.totalorder %s23, 1
      %p66 = por %p64, %p65
      %p67 = scmp.ne.s32.totalorder %s59, %s62
      %p68 = scmp.eq.s32.totalorder %s23, 0
      %p69 = por %p67, %p68
      %p70 = scmp.ne.s32.totalorder %s59, %s62
      %p71 = scmp.eq.s32.totalorder %s28, 1
      %p72 = por %p70, %p71
      %p73 = scmp.ne.s32.totalorder %s62, %s63
      %p74 = scmp.eq.s32.totalorder %s28, 0
      %p75 = por %p73, %p74
      %p76 = scmp.ne.s32.totalorder %s62, %s63
      %p77 = scmp.eq.s32.totalorder %s29, 1
      %p78 = por %p76, %p77
      %p80 = scmp.ne.s32.totalorder %s63, %s79
      %p81 = scmp.eq.s32.totalorder %s29, 0
      %p82 = por %p80, %p81
      %s83 = ssub.s32 %s23, %s30
      %p84 = scmp.eq.s32.totalorder %s83, 0
      %s86 = sadd.s32 %s85, 1
      %s87 = scalar_select %p84, %s85, %s86
      %p90 = pneg %p84
      %p91 = scmp.eq.s32.totalorder %s23, 1
      %p92 = por %p90, %p91
      %p93 = scmp.ne.s32.totalorder %s85, %s88
      %p94 = scmp.eq.s32.totalorder %s23, 0
      %p95 = por %p93, %p94
      %p96 = scmp.ne.s32.totalorder %s85, %s88
      %p97 = scmp.eq.s32.totalorder %s28, 1
      %p98 = por %p96, %p97
      %p99 = scmp.ne.s32.totalorder %s88, %s89
      %p100 = scmp.eq.s32.totalorder %s28, 0
      %p101 = por %p99, %p100
      %p102 = scmp.ne.s32.totalorder %s88, %s89
      %p103 = scmp.eq.s32.totalorder %s29, 1
      %p104 = por %p102, %p103
      %p106 = scmp.ne.s32.totalorder %s89, %s105
      %p107 = scmp.eq.s32.totalorder %s29, 0
      %p108 = por %p106, %p107
      %s109 = ssub.s32 %s23, %s30
      %p110 = scmp.eq.s32.totalorder %s109, 0
      %s112 = sadd.s32 %s111, 1
      %s113 = scalar_select %p110, %s111, %s112
      %p116 = pneg %p110
      %p117 = scmp.eq.s32.totalorder %s23, 1
      %p118 = por %p116, %p117
      %p119 = scmp.ne.s32.totalorder %s111, %s114
      %p120 = scmp.eq.s32.totalorder %s23, 0
      %p121 = por %p119, %p120
      %p122 = scmp.ne.s32.totalorder %s111, %s114
      %p123 = scmp.eq.s32.totalorder %s28, 1
      %p124 = por %p122, %p123
      %p125 = scmp.ne.s32.totalorder %s114, %s115
      %p126 = scmp.eq.s32.totalorder %s28, 0
      %p127 = por %p125, %p126
      %p128 = scmp.ne.s32.totalorder %s114, %s115
      %p129 = scmp.eq.s32.totalorder %s29, 1
      %p130 = por %p128, %p129
      %p132 = scmp.ne.s32.totalorder %s115, %s131
      %p133 = scmp.eq.s32.totalorder %s29, 0
      %p134 = por %p132, %p133
      %s135 = ssub.s32 %s23, %s30
      %p136 = scmp.eq.s32.totalorder %s135, 0
      %s138 = sadd.s32 %s137, 1
      %s139 = scalar_select %p136, %s137, %s138
      %p142 = pneg %p136
      %p143 = scmp.eq.s32.totalorder %s23, 1
      %p144 = por %p142, %p143
      %p145 = scmp.ne.s32.totalorder %s137, %s140
      %p146 = scmp.eq.s32.totalorder %s23, 0
      %p147 = por %p145, %p146
      %p148 = scmp.ne.s32.totalorder %s137, %s140
      %p149 = scmp.eq.s32.totalorder %s28, 1
      %p150 = por %p148, %p149
      %p151 = scmp.ne.s32.totalorder %s140, %s141
      %p152 = scmp.eq.s32.totalorder %s28, 0
      %p153 = por %p151, %p152
      %p154 = scmp.ne.s32.totalorder %s140, %s141
      %p155 = scmp.eq.s32.totalorder %s29, 1
      %p156 = por %p154, %p155
      %p158 = scmp.ne.s32.totalorder %s141, %s157
      %p159 = scmp.eq.s32.totalorder %s29, 0
      %p160 = por %p158, %p159
      %p161 = scmp.le.s32.totalorder 1, %s23
      %p162 = scmp.lt.s32.totalorder %s23, 3
      %p163 = pnand %p161, %p162
      %p164 = pneg %p163
      // Predicated region
      $region9: #{tpu_custom_call.1} parent=5 // pred_check
        _
      $region10: #{tpu_custom_call.1} parent=5 // pred_check_branch
        %166 = sbr.rel (%p163) target = $region12
      $region11: #{tpu_custom_call.1} parent=5 // pred_region
        %s167 = ssub.s32 %s23, 1
      $region12: #{tpu_custom_call.1} parent=5 // pred_fallthru
        _
      %p168 = scmp.lt.s32.totalorder %s23, 2
      // Predicated region
      $region13: #{tpu_custom_call.1} parent=5 // pred_check
        %p169 = pneg %p168
      $region14: #{tpu_custom_call.1} parent=5 // pred_check_branch
        %171 = sbr.rel (%p169) target = $region16
      $region15: #{tpu_custom_call.1} parent=5 // pred_region
        // Predicated region
        $region17: #{tpu_custom_call.1} parent=15 // pred_check
          %p172 = pneg %p43
        $region18: #{tpu_custom_call.1} parent=15 // pred_check_branch
          %174 = sbr.rel (%p172) target = $region20
        $region19: #{tpu_custom_call.1} parent=15 // pred_region
          %s175 = sand.u32 %s33, 1
          %s176 = scalar_lea.sflag [#allocation3], %s175
          %s177 = sand.u32 %s33, 1
          %s178 = smul.addr %s177, 8
          %s179 = scalar_lea.vmem [#allocation2], %s178
          %s181 = ssub.s32 128, 128
          %182 = vsyncadd %s176, %s181
          %s183 = smul.addr %s23, 128
          %s184 = scalar_lea.hbm %s0, %s183
          %s186 = sshll.u32 %s179, 4
          %s187 = int_to_ptr.vmem [resolvable:$true] %s186
          %189 = dma.hbm_to_vmem [thread:$0]  %s184, 128, %s187, %s176
        $region20: #{tpu_custom_call.1} parent=15 // pred_fallthru
          _
        // Predicated region
        $region21: #{tpu_custom_call.1} parent=15 // pred_check
          %p190 = pneg %p69
        $region22: #{tpu_custom_call.1} parent=15 // pred_check_branch
          %192 = sbr.rel (%p190) target = $region24
        $region23: #{tpu_custom_call.1} parent=15 // pred_region
          %s193 = sand.u32 %s23, 1
          %s194 = scalar_lea.sflag [#allocation6], %s193
          %s195 = sand.u32 %s59, 1
          %s196 = smul.addr %s195, 64
          %s197 = scalar_lea.vmem [#allocation5], %s196
          %s199 = ssub.s32 1024, 1024
          %200 = vsyncadd %s194, %s199
          %s201 = smul.addr %s23, 128
          %s202 = scalar_lea.hbm %s1, %s201
          %s203 = sshll.u32 %s197, 4
          %s204 = int_to_ptr.vmem [resolvable:$true] %s203
          %209 = dma.hbm_to_vmem [thread:$0]  %s202, 1024, %s204, %s194, 256, 128, 8
        $region24: #{tpu_custom_call.1} parent=15 // pred_fallthru
          _
        // Predicated region
        $region25: #{tpu_custom_call.1} parent=15 // pred_check
          %p210 = pneg %p95
        $region26: #{tpu_custom_call.1} parent=15 // pred_check_branch
          %212 = sbr.rel (%p210) target = $region28
        $region27: #{tpu_custom_call.1} parent=15 // pred_region
          %s213 = sand.u32 %s23, 1
          %s214 = scalar_lea.sflag [#allocation6], %s213
          %s215 = sand.u32 %s85, 1
          %s216 = smul.addr %s215, 72
          %s217 = scalar_lea.vmem [#allocation7], %s216
          %s219 = ssub.s32 1152, 1152
          %220 = vsyncadd %s214, %s219
          %s221 = smul.addr %s23, 128
          %s222 = scalar_lea.hbm %s2, %s221
          %s223 = sshll.u32 %s217, 4
          %s224 = int_to_ptr.vmem [resolvable:$true] %s223
          %229 = dma.hbm_to_vmem [thread:$0]  %s222, 1152, %s224, %s214, 256, 128, 8
        $region28: #{tpu_custom_call.1} parent=15 // pred_fallthru
          _
      $region16: #{tpu_custom_call.1} parent=5 // pred_fallthru
        _
      %p230 = scmp.le.s32.totalorder 1, %s23
      %p231 = scmp.lt.s32.totalorder %s23, 3
      %p232 = pnand %p230, %p231
      %p233 = pneg %p232
      // Predicated region
      $region29: #{tpu_custom_call.1} parent=5 // pred_check
        _
      $region30: #{tpu_custom_call.1} parent=5 // pred_check_branch
        %235 = sbr.rel (%p232) target = $region32
      $region31: #{tpu_custom_call.1} parent=5 // pred_region
        %s236 = ssub.s32 %s23, 1
        %s237 = sand.u32 %s36, 1
        %s238 = scalar_lea.sflag [#allocation3], %s237
        %s239 = sand.u32 %s36, 1
        %s240 = smul.addr %s239, 8
        %s241 = scalar_lea.vmem [#allocation2], %s240
        // Predicated region
        $region33: #{tpu_custom_call.1} parent=31 // pred_check
          %p242 = pneg %p49
        $region34: #{tpu_custom_call.1} parent=31 // pred_check_branch
          %244 = sbr.rel (%p242) target = $region36
        $region35: #{tpu_custom_call.1} parent=31 // pred_region
          %245 = dma.done %s238, 128
        $region36: #{tpu_custom_call.1} parent=31 // pred_fallthru
          _
        %s246 = sand.u32 %s28, 1
        %s247 = scalar_lea.sflag [#allocation6], %s246
        %s248 = sand.u32 %s62, 1
        %s249 = smul.addr %s248, 64
        %s250 = scalar_lea.vmem [#allocation5], %s249
        // Predicated region
        $region37: #{tpu_custom_call.1} parent=31 // pred_check
          %p251 = pneg %p75
        $region38: #{tpu_custom_call.1} parent=31 // pred_check_branch
          %253 = sbr.rel (%p251) target = $region40
        $region39: #{tpu_custom_call.1} parent=31 // pred_region
          %254 = dma.done %s247, 1024
        $region40: #{tpu_custom_call.1} parent=31 // pred_fallthru
          _
        %s255 = sand.u32 %s28, 1
        %s256 = scalar_lea.sflag [#allocation6], %s255
        %s257 = sand.u32 %s88, 1
        %s258 = smul.addr %s257, 72
        %s259 = scalar_lea.vmem [#allocation7], %s258
        // Predicated region
        $region41: #{tpu_custom_call.1} parent=31 // pred_check
          %p260 = pneg %p101
        $region42: #{tpu_custom_call.1} parent=31 // pred_check_branch
          %262 = sbr.rel (%p260) target = $region44
        $region43: #{tpu_custom_call.1} parent=31 // pred_region
          %263 = dma.done %s256, 1152
        $region44: #{tpu_custom_call.1} parent=31 // pred_fallthru
          _
        %s264 = sand.u32 %s36, 1
        %s265 = scalar_lea.sflag [#allocation3], %s264
        %s266 = sand.u32 %s36, 1
        %s267 = smul.addr %s266, 8
        %s268 = scalar_lea.vmem [#allocation2], %s267
        %p269 = pneg %p49
        %p270 = pneg %p46
        %s271 = sand.u32 %s28, 1
        %s272 = scalar_lea.sflag [#allocation6], %s271
        %s273 = sand.u32 %s62, 1
        %s274 = smul.addr %s273, 64
        %s275 = scalar_lea.vmem [#allocation5], %s274
        %p276 = pneg %p75
        %p277 = pneg %p72
        %s278 = sand.u32 %s28, 1
        %s279 = scalar_lea.sflag [#allocation6], %s278
        %s280 = sand.u32 %s88, 1
        %s281 = smul.addr %s280, 72
        %s282 = scalar_lea.vmem [#allocation7], %s281
        %p283 = pneg %p101
        %p284 = pneg %p98
        %p285 = pneg %p127
        %p286 = pneg %p124
        %s287 = sand.u32 %s114, 1
        %s288 = scalar_lea.sflag [#allocation4], %s287
        %s289 = sand.u32 %s114, 1
        %s290 = smul.addr %s289, 8
        %s291 = scalar_lea.vmem [#allocation8], %s290
        %p292 = pneg %p153
        %p293 = pneg %p150
        %s294 = sand.u32 %s140, 1
        %s295 = scalar_lea.sflag [#allocation10], %s294
        %s296 = sand.u32 %s140, 1
        %s297 = smul.addr %s296, 8
        %s298 = scalar_lea.vmem [#allocation9], %s297
        %v299 = vld [vmem:[%s241] sm:$0xff]
        %vm300 = vcmp.ge.f32.partialorder %v299, -3.0
        %vm301 = vcmp.le.f32.partialorder %v299, 3.0
        %vm302 = vmand %vm300, %vm301
        %v303 = vsel %vm302, %v299, 0.0
        %v304 = vadd.f32 %v303, 3.0
        %v305 = vmul.f32 %v304, 0.16666667
        %v306 = vld [vmem:[%s250] sm:$0xff]
        %s307 = sadd.s32 0, 8
        %s308 = scalar_lea.vmem %s250, %s307 [#allocation5]
        %v309 = vld [vmem:[%s308] sm:$0xff]
        %s310 = sadd.s32 0, 16
        %s311 = scalar_lea.vmem %s250, %s310 [#allocation5]
        %v312 = vld [vmem:[%s311] sm:$0xff]
        %s313 = sadd.s32 0, 24
        %s314 = scalar_lea.vmem %s250, %s313 [#allocation5]
        %v315 = vld [vmem:[%s314] sm:$0xff]
        %s316 = sadd.s32 0, 32
        %s317 = scalar_lea.vmem %s250, %s316 [#allocation5]
        %v318 = vld [vmem:[%s317] sm:$0xff]
        %s319 = sadd.s32 0, 40
        %s320 = scalar_lea.vmem %s250, %s319 [#allocation5]
        %v321 = vld [vmem:[%s320] sm:$0xff]
        %s322 = sadd.s32 0, 48
        %s323 = scalar_lea.vmem %s250, %s322 [#allocation5]
        %v324 = vld [vmem:[%s323] sm:$0xff]
        %s325 = sadd.s32 0, 56
        %s326 = scalar_lea.vmem %s250, %s325 [#allocation5]
        %v327 = vld [vmem:[%s326] sm:$0xff]
        %v328 = vmax.f32 %v306, %v309
        %v329 = vmax.f32 %v328, %v312
        %v330 = vmax.f32 %v329, %v315
        %v331 = vmax.f32 %v330, %v318
        %v332 = vmax.f32 %v331, %v321
        %v333 = vmax.f32 %v332, %v324
        %v334 = vmax.f32 %v333, %v327
        %v335 = vsub.f32 %v306, %v334
        %v336 = vmul.f32 %v335, 1.442695
        %v337 = vpow.pop %v336
        %v338 = vsub.f32 %v309, %v334
        %v339 = vmul.f32 %v338, 1.442695
        %v340 = vpow.pop %v339
        %v341 = vsub.f32 %v312, %v334
        %v342 = vmul.f32 %v341, 1.442695
        %v343 = vpow.pop %v342
        %v344 = vsub.f32 %v315, %v334
        %v345 = vmul.f32 %v344, 1.442695
        %v346 = vpow.pop %v345
        %v347 = vsub.f32 %v318, %v334
        %v348 = vmul.f32 %v347, 1.442695
        %v349 = vpow.pop %v348
        %v350 = vsub.f32 %v321, %v334
        %v351 = vmul.f32 %v350, 1.442695
        %v352 = vpow.pop %v351
        %v353 = vsub.f32 %v324, %v334
        %v354 = vmul.f32 %v353, 1.442695
        %v355 = vpow.pop %v354
        %v356 = vsub.f32 %v327, %v334
        %v357 = vmul.f32 %v356, 1.442695
        %v358 = vpow.pop %v357
        %v359 = vadd.f32 %v337, %v340
        %v360 = vadd.f32 %v359, %v343
        %v361 = vadd.f32 %v360, %v346
        %v362 = vadd.f32 %v361, %v349
        %v363 = vadd.f32 %v362, %v352
        %v364 = vadd.f32 %v363, %v355
        %v365 = vadd.f32 %v364, %v358
        %v366 = vrcp.pop %v365
        %v367 = vmul.f32 %v365, %v366
        %v368 = vsub.f32 2.0, %v367
        %v369 = vmul.f32 %v366, %v368
        %v370 = vmul.f32 %v365, %v369
        %v371 = vsub.f32 2.0, %v370
        %v372 = vmul.f32 %v369, %v371
        %v373 = vmul.f32 %v372, 0.992
        %v374 = vmul.f32 %v337, %v373
        %v375 = vadd.f32 %v374, 0.001
        %v376 = vmul.f32 %v340, %v373
        %v377 = vadd.f32 %v376, 0.001
        %v378 = vmul.f32 %v343, %v373
        %v379 = vadd.f32 %v378, 0.001
        %v380 = vmul.f32 %v346, %v373
        %v381 = vadd.f32 %v380, 0.001
        %v382 = vmul.f32 %v349, %v373
        %v383 = vadd.f32 %v382, 0.001
        %v384 = vmul.f32 %v352, %v373
        %v385 = vadd.f32 %v384, 0.001
        %v386 = vmul.f32 %v355, %v373
        %v387 = vadd.f32 %v386, 0.001
        %v388 = vmul.f32 %v358, %v373
        %v389 = vadd.f32 %v388, 0.001
        %v390 = vld [vmem:[%s259] sm:$0xff]
        %v391 = vmul.f32 %v390, 1.442695
        %v392 = vpow.pop %v391
        %s393 = scalar_lea.vmem %s259, %s307 [#allocation7]
        %v394 = vld [vmem:[%s393] sm:$0xff]
        %v395 = vmul.f32 %v394, 1.442695
        %v396 = vpow.pop %v395
        %s397 = scalar_lea.vmem %s259, %s310 [#allocation7]
        %v398 = vld [vmem:[%s397] sm:$0xff]
        %v399 = vmul.f32 %v398, 1.442695
        %v400 = vpow.pop %v399
        %s401 = scalar_lea.vmem %s259, %s313 [#allocation7]
        %v402 = vld [vmem:[%s401] sm:$0xff]
        %v403 = vmul.f32 %v402, 1.442695
        %v404 = vpow.pop %v403
        %s405 = scalar_lea.vmem %s259, %s316 [#allocation7]
        %v406 = vld [vmem:[%s405] sm:$0xff]
        %v407 = vmul.f32 %v406, 1.442695
        %v408 = vpow.pop %v407
        %s409 = scalar_lea.vmem %s259, %s319 [#allocation7]
        %v410 = vld [vmem:[%s409] sm:$0xff]
        %v411 = vmul.f32 %v410, 1.442695
        %v412 = vpow.pop %v411
        %s413 = scalar_lea.vmem %s259, %s322 [#allocation7]
        %v414 = vld [vmem:[%s413] sm:$0xff]
        %v415 = vmul.f32 %v414, 1.442695
        %v416 = vpow.pop %v415
        %s417 = scalar_lea.vmem %s259, %s325 [#allocation7]
        %v418 = vld [vmem:[%s417] sm:$0xff]
        %v419 = vmul.f32 %v418, 1.442695
        %v420 = vpow.pop %v419
        %s421 = sadd.s32 0, 64
        %s422 = scalar_lea.vmem %s259, %s421 [#allocation7]
        %v423 = vld [vmem:[%s422] sm:$0xff]
        %v424 = vmul.f32 %v423, 1.442695
        %v425 = vpow.pop %v424
        %v426 = vadd.f32 %v392, %v396
        %v427 = vmul.f32 %v426, %v375
        %v428 = vadd.f32 %v396, %v400
        %v429 = vmul.f32 %v428, %v377
        %v430 = vadd.f32 %v427, %v429
        %v431 = vadd.f32 %v400, %v404
        %v432 = vmul.f32 %v431, %v379
        %v433 = vadd.f32 %v430, %v432
        %v434 = vadd.f32 %v404, %v408
        %v435 = vmul.f32 %v434, %v381
        %v436 = vadd.f32 %v433, %v435
        %v437 = vadd.f32 %v408, %v412
        %v438 = vmul.f32 %v437, %v383
        %v439 = vadd.f32 %v436, %v438
        %v440 = vadd.f32 %v412, %v416
        %v441 = vmul.f32 %v440, %v385
        %v442 = vadd.f32 %v439, %v441
        %v443 = vadd.f32 %v416, %v420
        %v444 = vmul.f32 %v443, %v387
        %v445 = vadd.f32 %v442, %v444
        %v446 = vadd.f32 %v420, %v425
        %v447 = vmul.f32 %v446, %v389
        %v448 = vadd.f32 %v445, %v447
        %v449 = vrcp.pop %v448
        %v450 = vmul.f32 %v448, %v449
        %v451 = vsub.f32 2.0, %v450
        %v452 = vmul.f32 %v449, %v451
        %v453 = vmul.f32 %v448, %v452
        %v454 = vsub.f32 2.0, %v453
        %v455 = vmul.f32 %v452, %v454
        %v456 = vmul.f32 %v455, 1.998
        %v457 = vmul.f32 %v392, %v456
        %v458 = vadd.f32 %v457, 0.001
        %v459 = vmul.f32 %v396, %v456
        %v460 = vadd.f32 %v459, 0.001
        %v461 = vmul.f32 %v400, %v456
        %v462 = vadd.f32 %v461, 0.001
        %v463 = vmul.f32 %v404, %v456
        %v464 = vadd.f32 %v463, 0.001
        %v465 = vmul.f32 %v408, %v456
        %v466 = vadd.f32 %v465, 0.001
        %v467 = vmul.f32 %v412, %v456
        %v468 = vadd.f32 %v467, 0.001
        %v469 = vmul.f32 %v416, %v456
        %v470 = vadd.f32 %v469, 0.001
        %v471 = vmul.f32 %v420, %v456
        %v472 = vadd.f32 %v471, 0.001
        %v473 = vmul.f32 %v425, %v456
        %v474 = vadd.f32 %v473, 0.001
        %v475 = vadd.f32 %v458, %v460
        %v476 = vmul.f32 %v475, %v375
        %vm477 = vcmp.ge.f32.partialorder %v305, %v375
        %v478 = vsel %vm477, %v375, 0.0
        %v479 = vsel %vm477, %v476, 0.0
        %v480 = vsel %vm477, %v460, %v458
        %v481 = vsel %vm477, %v462, %v460
        %v482 = vsel %vm477, %v377, %v375
        %v483 = vadd.f32 %v375, %v377
        %v484 = vadd.f32 %v460, %v462
        %v485 = vmul.f32 %v484, %v377
        %v486 = vadd.f32 %v476, %v485
        %vm487 = vcmp.ge.f32.partialorder %v305, %v483
        %v488 = vsel %vm487, %v483, %v478
        %v489 = vsel %vm487, %v486, %v479
        %v490 = vsel %vm487, %v462, %v480
        %v491 = vsel %vm487, %v464, %v481
        %v492 = vsel %vm487, %v379, %v482
        %v493 = vadd.f32 %v483, %v379
        %v494 = vadd.f32 %v462, %v464
        %v495 = vmul.f32 %v494, %v379
        %v496 = vadd.f32 %v486, %v495
        %vm497 = vcmp.ge.f32.partialorder %v305, %v493
        %v498 = vsel %vm497, %v493, %v488
        %v499 = vsel %vm497, %v496, %v489
        %v500 = vsel %vm497, %v464, %v490
        %v501 = vsel %vm497, %v466, %v491
        %v502 = vsel %vm497, %v381, %v492
        %v503 = vadd.f32 %v493, %v381
        %v504 = vadd.f32 %v464, %v466
        %v505 = vmul.f32 %v504, %v381
        %v506 = vadd.f32 %v496, %v505
        %vm507 = vcmp.ge.f32.partialorder %v305, %v503
        %v508 = vsel %vm507, %v503, %v498
        %v509 = vsel %vm507, %v506, %v499
        %v510 = vsel %vm507, %v466, %v500
        %v511 = vsel %vm507, %v468, %v501
        %v512 = vsel %vm507, %v383, %v502
        %v513 = vadd.f32 %v503, %v383
        %v514 = vadd.f32 %v466, %v468
        %v515 = vmul.f32 %v514, %v383
        %v516 = vadd.f32 %v506, %v515
        %vm517 = vcmp.ge.f32.partialorder %v305, %v513
        %v518 = vsel %vm517, %v513, %v508
        %v519 = vsel %vm517, %v516, %v509
        %v520 = vsel %vm517, %v468, %v510
        %v521 = vsel %vm517, %v470, %v511
        %v522 = vsel %vm517, %v385, %v512
        %v523 = vadd.f32 %v513, %v385
        %v524 = vadd.f32 %v468, %v470
        %v525 = vmul.f32 %v524, %v385
        %v526 = vadd.f32 %v516, %v525
        %vm527 = vcmp.ge.f32.partialorder %v305, %v523
        %v528 = vsel %vm527, %v523, %v518
        %v529 = vsel %vm527, %v526, %v519
        %v530 = vsel %vm527, %v470, %v520
        %v531 = vsel %vm527, %v472, %v521
        %v532 = vsel %vm527, %v387, %v522
        %v533 = vadd.f32 %v523, %v387
        %v534 = vadd.f32 %v470, %v472
        %v535 = vmul.f32 %v534, %v387
        %v536 = vadd.f32 %v526, %v535
        %vm537 = vcmp.ge.f32.partialorder %v305, %v533
        %v538 = vsel %vm537, %v533, %v528
        %v539 = vsel %vm537, %v536, %v529
        %v540 = vsel %vm537, %v472, %v530
        %v541 = vsel %vm537, %v474, %v531
        %v542 = vsel %vm537, %v389, %v532
        %v543 = vsub.f32 %v541, %v540
        %v544 = vmul.f32 %v543, 0.5
        %v545 = vmul.f32 %v544, %v542
        %v546 = vmul.f32 %v540, %v542
        %v547 = vsub.f32 %v305, %v538
        %v548 = vrcp.pop %v542
        %v549 = vmul.f32 %v542, %v548
        %v550 = vsub.f32 2.0, %v549
        %v551 = vmul.f32 %v548, %v550
        %v552 = vmul.f32 %v542, %v551
        %v553 = vsub.f32 2.0, %v552
        %v554 = vmul.f32 %v551, %v553
        %v555 = vmul.f32 %v547, %v554
        %v556 = vmul.f32 %v545, %v555
        %v557 = vmul.f32 %v556, %v555
        %v558 = vmul.f32 %v546, %v555
        %v559 = vadd.f32 %v557, %v558
        %v560 = vmul.f32 %v539, 0.5
        %v561 = vadd.f32 %v559, %v560
        %v562 = vmax.f32 %v561, 0.0
        %v563 = vmin.f32 %v562, 1.0
        %v564 = vmul.f32 %v555, %v543
        %v565 = vadd.f32 %v564, %v540
        %v566 = vlog2.pop %v565
        %v567 = vmul.f32 %v566, 0.6931472
        %v568 = vmul.f32 %v563, 6.0
        %v569 = vsub.f32 %v568, 3.0
        %v570 = vsel %vm302, %v569, %v299
        %571 = vst [vmem:[%s291] sm:$0xff] %v570
        %v572 = vsel %vm302, %v567, 0.0
        %573 = vst [vmem:[%s298] sm:$0xff] %v572
        %s574 = sand.u32 %s114, 1
        %s575 = scalar_lea.sflag [#allocation4], %s574
        %s576 = sand.u32 %s114, 1
        %s577 = smul.addr %s576, 8
        %s578 = scalar_lea.vmem [#allocation8], %s577
        %s579 = sand.u32 %s140, 1
        %s580 = scalar_lea.sflag [#allocation10], %s579
        %s581 = sand.u32 %s140, 1
        %s582 = smul.addr %s581, 8
        %s583 = scalar_lea.vmem [#allocation9], %s582
        // Predicated region
        $region45: #{tpu_custom_call.1} parent=31 // pred_check
          %p584 = pneg %p124
        $region46: #{tpu_custom_call.1} parent=31 // pred_check_branch
          %586 = sbr.rel (%p584) target = $region48
        $region47: #{tpu_custom_call.1} parent=31 // pred_region
          %s588 = ssub.s32 128, 128
          %589 = vsyncadd %s575, %s588
          %s590 = smul.addr %s28, 128
          %s591 = scalar_lea.hbm %s3, %s590
          %s593 = sshll.u32 %s578, 4
          %s594 = int_to_ptr.vmem [resolvable:$true] %s593
          %596 = dma.vmem_to_hbm [thread:$0]  %s594, 128, %s591, %s575
        $region48: #{tpu_custom_call.1} parent=31 // pred_fallthru
          _
        // Predicated region
        $region49: #{tpu_custom_call.1} parent=31 // pred_check
          %p597 = pneg %p150
        $region50: #{tpu_custom_call.1} parent=31 // pred_check_branch
          %599 = sbr.rel (%p597) target = $region52
        $region51: #{tpu_custom_call.1} parent=31 // pred_region
          %s601 = ssub.s32 128, 128
          %602 = vsyncadd %s580, %s601
          %s603 = smul.addr %s28, 128
          %s604 = scalar_lea.hbm %s4, %s603
          %s606 = sshll.u32 %s583, 4
          %s607 = int_to_ptr.vmem [resolvable:$true] %s606
          %609 = dma.vmem_to_hbm [thread:$0]  %s607, 128, %s604, %s580
        $region52: #{tpu_custom_call.1} parent=31 // pred_fallthru
          _
      $region32: #{tpu_custom_call.1} parent=5 // pred_fallthru
        _
      %p610 = scmp.le.s32.totalorder 2, %s23
      // Predicated region
      $region53: #{tpu_custom_call.1} parent=5 // pred_check
        %p611 = pneg %p610
      $region54: #{tpu_custom_call.1} parent=5 // pred_check_branch
        %613 = sbr.rel (%p611) target = $region56
      $region55: #{tpu_custom_call.1} parent=5 // pred_region
        %s614 = ssub.s32 %s23, 2
        // Predicated region
        $region57: #{tpu_custom_call.1} parent=55 // pred_check
          %p615 = pneg %p130
        $region58: #{tpu_custom_call.1} parent=55 // pred_check_branch
          %617 = sbr.rel (%p615) target = $region60
        $region59: #{tpu_custom_call.1} parent=55 // pred_region
          %s618 = sand.u32 %s115, 1
          %s619 = scalar_lea.sflag [#allocation4], %s618
          %s620 = sand.u32 %s115, 1
          %s621 = smul.addr %s620, 8
          %s622 = scalar_lea.vmem [#allocation8], %s621
          %623 = dma.done %s619, 128
        $region60: #{tpu_custom_call.1} parent=55 // pred_fallthru
          _
        // Predicated region
        $region61: #{tpu_custom_call.1} parent=55 // pred_check
          %p624 = pneg %p156
        $region62: #{tpu_custom_call.1} parent=55 // pred_check_branch
          %626 = sbr.rel (%p624) target = $region64
        $region63: #{tpu_custom_call.1} parent=55 // pred_region
          %s627 = sand.u32 %s141, 1
          %s628 = scalar_lea.sflag [#allocation10], %s627
          %s629 = sand.u32 %s141, 1
          %s630 = smul.addr %s629, 8
          %s631 = scalar_lea.vmem [#allocation9], %s630
          %632 = dma.done %s628, 128
        $region64: #{tpu_custom_call.1} parent=55 // pred_fallthru
          _
      $region56: #{tpu_custom_call.1} parent=5 // pred_fallthru
        _
    $region6: #{tpu_custom_call.1} parent=1 // loop_footer
      %s27 = sadd.s32 1, %s23
    $region7: #{tpu_custom_call.1} parent=1 // loop_footer_branch
      %22 = sbr.rel target = $region3
    $region8: #{tpu_custom_call.1} parent=1 // loop_exit
      _
    %633 = vsyncpa [#allocation3], 1
    %s634 = scalar_lea.sflag [#allocation3], 1
    %635 = vsyncpa %s634, 1
    %636 = vsyncpa [#allocation6], 1
    %s637 = scalar_lea.sflag [#allocation6], 1
    %638 = vsyncpa %s637, 1
    %639 = vsyncpa [#allocation4], 1
    %s640 = scalar_lea.sflag [#allocation4], 1
    %641 = vsyncpa %s640, 1
    %642 = vsyncpa [#allocation10], 1
    %s643 = scalar_lea.sflag [#allocation10], 1
    %644 = vsyncpa %s643, 1

</llo_original>
